<compile_context>
chip_gen: v7x
topology: tpu7x:2x2x1
jax: 0.10.0
libtpu: 0.0.40
codegen_flags: <defaults>
</compile_context>

<pallas_src>
import functools
import math

import jax
import jax.numpy as jnp
from jax.experimental import pallas as pl
from jax.experimental.pallas import tpu as pltpu


# --------------------------------------------------------------------------
# Kernel 1: fused QKV projection (scale pre-folded into the Q columns)
# --------------------------------------------------------------------------
def qkv_proj_kernel(x_ref, w_ref, b_ref, qkv_ref, *, mxu_dtype):
    # x_ref:   [TS, H]   (f32 activations tile)
    # w_ref:   [H, 3H]   (mxu_dtype, Q columns pre-scaled)
    # b_ref:   [1, 3H]   (f32, Q entries pre-scaled)
    # qkv_ref: [TS, 3H]  (mxu_dtype)
    x = x_ref[...].astype(mxu_dtype)
    acc = jnp.dot(x, w_ref[...], preferred_element_type=jnp.float32)
    qkv_ref[...] = (acc + b_ref[...]).astype(qkv_ref.dtype)


def qkv_projection(x, w_mxu, b_f32, *, block_s, mxu_dtype):
    S, H = x.shape
    threeH = w_mxu.shape[1]
    grid = (S // block_s,)
    return pl.pallas_call(
        functools.partial(qkv_proj_kernel, mxu_dtype=mxu_dtype),
        out_shape=jax.ShapeDtypeStruct((S, threeH), mxu_dtype),
        grid=grid,
        in_specs=[
            pl.BlockSpec((block_s, H), lambda i: (i, 0)),      # activations: tiled
            pl.BlockSpec((H, threeH), lambda i: (0, 0)),       # weights: resident
            pl.BlockSpec((1, threeH), lambda i: (0, 0)),       # bias: resident
        ],
        out_specs=pl.BlockSpec((block_s, threeH), lambda i: (i, 0)),
        compiler_params=pltpu.CompilerParams(
            dimension_semantics=("parallel",)),
    )(x, w_mxu, b_f32)


# --------------------------------------------------------------------------
# Kernel 2: multi-head bidirectional attention (flash-style online softmax)
# --------------------------------------------------------------------------
def mha_flash_kernel(q_ref, k_ref, v_ref, o_ref, m_sc, l_sc, acc_sc):
    # q_ref: [nh, TQ, d]   (scale already folded into q)
    # k_ref: [nh, TK, d]
    # v_ref: [nh, TK, d]
    # o_ref: [nh, TQ, d]
    kv = pl.program_id(1)

    @pl.when(kv == 0)
    def _():
        m_sc[...] = jnp.full(m_sc.shape, -jnp.inf, jnp.float32)
        l_sc[...] = jnp.zeros(l_sc.shape, jnp.float32)
        acc_sc[...] = jnp.zeros(acc_sc.shape, jnp.float32)

    # Batched over heads on the MXU; contraction on the minor (d) dim — no k.T.
    s = jnp.einsum("hqd,hkd->hqk", q_ref[...], k_ref[...],
                   preferred_element_type=jnp.float32)         # [nh, TQ, TK] f32

    m_prev = m_sc[...]
    m_new = jnp.maximum(m_prev, s.max(axis=-1, keepdims=True))
    alpha = jnp.exp(m_prev - m_new)
    p = jnp.exp(s - m_new)

    l_sc[...] = alpha * l_sc[...] + p.sum(axis=-1, keepdims=True)
    acc_sc[...] = alpha * acc_sc[...] + jnp.einsum(
        "hqk,hkd->hqd", p.astype(v_ref.dtype), v_ref[...],
        preferred_element_type=jnp.float32)
    m_sc[...] = m_new

    @pl.when(kv == pl.num_programs(1) - 1)
    def _():
        inv_l = pl.reciprocal(l_sc[...], approx=True)          # EUP slot
        o_ref[...] = (acc_sc[...] * inv_l).astype(o_ref.dtype)


def mha_attention(q, k, v, *, block_q, block_kv, out_dtype):
    nh, S, d = q.shape
    grid = (S // block_q, S // block_kv)
    return pl.pallas_call(
        mha_flash_kernel,
        out_shape=jax.ShapeDtypeStruct((nh, S, d), out_dtype),
        grid=grid,
        in_specs=[
            pl.BlockSpec((nh, block_q, d), lambda i, j: (0, i, 0)),
            pl.BlockSpec((nh, block_kv, d), lambda i, j: (0, j, 0)),
            pl.BlockSpec((nh, block_kv, d), lambda i, j: (0, j, 0)),
        ],
        out_specs=pl.BlockSpec((nh, block_q, d), lambda i, j: (0, i, 0)),
        scratch_shapes=[
            pltpu.VMEM((nh, block_q, 1), jnp.float32),   # running max
            pltpu.VMEM((nh, block_q, 1), jnp.float32),   # running denom
            pltpu.VMEM((nh, block_q, d), jnp.float32),   # output accumulator
        ],
        compiler_params=pltpu.CompilerParams(
            dimension_semantics=("parallel", "arbitrary")),
    )(q, k, v)


# --------------------------------------------------------------------------
# Wrapper: BertSelfAttention.forward
# --------------------------------------------------------------------------
def _pick_block(S, target=256):
    if S <= target or S % 8 != 0:
        return S
    for b in range(target, 7, -8):
        if S % b == 0:
            return b
    return S


def bert_self_attention(positions, hidden_states, wqkv, bqkv, *,
                        num_heads, mxu_dtype=jnp.bfloat16,
                        block_q=None, block_kv=None):
    """positions: [S] int32 (unused — rotary_kwargs=None in the reference config).
    hidden_states: [S, H] f32.  wqkv: [H, 3H].  bqkv: [1, 3H]."""
    # TODO(synk): rotary embedding not implemented (rotary_kwargs=None in reference).
    del positions

    S, H = hidden_states.shape
    d = H // num_heads
    assert d * num_heads == H
    scale = float(d) ** -0.5

    block_s = _pick_block(S)
    block_q = block_q or _pick_block(S)
    block_kv = block_kv or _pick_block(S)
    assert S % block_s == 0 and S % block_q == 0 and S % block_kv == 0

    # Fold the 1/sqrt(head_dim) scale into the Q columns of W and b, and
    # pre-cast the weights to the MXU dtype (bf16 with f32 accumulation).
    col_scale = jnp.concatenate(
        [jnp.full((H,), scale, jnp.float32), jnp.ones((2 * H,), jnp.float32)])
    w_mxu = (wqkv.astype(jnp.float32) * col_scale[None, :]).astype(mxu_dtype)
    b_f32 = bqkv.astype(jnp.float32) * col_scale[None, :]

    # --- Kernel 1: QKV projection (token-tiled, weights resident) ---
    qkv = qkv_projection(hidden_states, w_mxu, b_f32,
                         block_s=block_s, mxu_dtype=mxu_dtype)   # [S, 3H]

    # --- layout plumbing: [S, H] -> head-major [nh, S, d] (lane dim = d) ---
    def to_head_major(t):
        return t.reshape(S, num_heads, d).transpose(1, 0, 2)

    q = to_head_major(qkv[:, 0 * H:1 * H])
    k = to_head_major(qkv[:, 1 * H:2 * H])
    v = to_head_major(qkv[:, 2 * H:3 * H])

    # --- Kernel 2: flash attention over (q tiles, kv tiles) ---
    o = mha_attention(q, k, v, block_q=block_q, block_kv=block_kv,
                      out_dtype=jnp.float32)                     # [nh, S, d]

    return o.transpose(1, 0, 2).reshape(S, H).astype(hidden_states.dtype)


# --------------------------------------------------------------------------
# Pure-JAX reference (numerical sanity check)
# --------------------------------------------------------------------------
def _ref_self_attention(positions, x, wqkv, bqkv, *, num_heads):
    del positions
    S, H = x.shape
    d = H // num_heads
    scale = float(d) ** -0.5
    hi = jax.lax.Precision.HIGHEST

    qkv = jnp.dot(x, wqkv, precision=hi) + bqkv
    q, k, v = qkv[:, :H], qkv[:, H:2 * H], qkv[:, 2 * H:]
    q = q.reshape(S, num_heads, d).transpose(1, 0, 2)
    k = k.reshape(S, num_heads, d).transpose(1, 0, 2)
    v = v.reshape(S, num_heads, d).transpose(1, 0, 2)
    s = jnp.einsum("hqd,hkd->hqk", q, k, precision=hi) * scale
    p = jax.nn.softmax(s, axis=-1)
    o = jnp.einsum("hqk,hkd->hqd", p, v, precision=hi)
    return o.transpose(1, 0, 2).reshape(S, H)


# --------------------------------------------------------------------------
# Example run
# --------------------------------------------------------------------------
if __name__ == "__main__":
    SEQ = 8
    HIDDEN = 32
    NUM_HEADS = 4

    root = jax.random.PRNGKey(0)
    k_x, k_w, k_b = jax.random.split(root, 3)

    hidden_states = jax.random.normal(k_x, (SEQ, HIDDEN), jnp.float32)
    positions = jnp.arange(SEQ, dtype=jnp.int32)  # unused (no rotary)
    wqkv = jax.random.normal(k_w, (HIDDEN, 3 * HIDDEN), jnp.float32) * 0.02
    bqkv = jax.random.normal(k_b, (1, 3 * HIDDEN), jnp.float32) * 0.02

    out = bert_self_attention(positions, hidden_states, wqkv, bqkv,
                              num_heads=NUM_HEADS)
    out = jax.block_until_ready(out)

    ref = _ref_self_attention(positions, hidden_states, wqkv, bqkv,
                              num_heads=NUM_HEADS)
    max_err = float(jnp.max(jnp.abs(out - ref)))
    assert out.shape == (SEQ, HIDDEN)
    assert max_err < 1e-2, f"mismatch vs reference: {max_err}"

    print("KERNEL_OK")
</pallas_src>

<mosaic_0001>
module attributes {stable_mosaic.version = 11 : i64} {
  func.func @qkv_proj_kernel(%arg0: i32, %arg1: memref<8x32xf32, #tpu.memory_space<vmem>>, %arg2: memref<32x96xbf16, #tpu.memory_space<vmem>>, %arg3: memref<1x96xf32, #tpu.memory_space<vmem>>, %arg4: memref<8x96xbf16, #tpu.memory_space<vmem>>) attributes {dimension_semantics = [#tpu.dimension_semantics<parallel>], iteration_bounds = array<i64: 1>, scalar_prefetch = 0 : i64, scratch_operands = 0 : i64, tpu.core_type = #tpu.core_type<tc>, window_params = [{transform_indices = @transform_0, window_bounds = array<i64: 8, 32>}, {pipeline_mode = #tpu.pipeline_mode<synchronous>, transform_indices = @transform_1, window_bounds = array<i64: 32, 96>}, {pipeline_mode = #tpu.pipeline_mode<synchronous>, transform_indices = @transform_2, window_bounds = array<i64: 1, 96>}, {transform_indices = @transform_3, window_bounds = array<i64: 8, 96>}]} {
    %c0 = arith.constant 0 : index
    %c0_0 = arith.constant 0 : index
    %0 = vector.load %arg1[%c0, %c0_0] : memref<8x32xf32, #tpu.memory_space<vmem>>, vector<8x32xf32>
    %1 = arith.truncf %0 : vector<8x32xf32> to vector<8x32xbf16>
    %c0_1 = arith.constant 0 : index
    %c0_2 = arith.constant 0 : index
    %2 = vector.load %arg2[%c0_1, %c0_2] : memref<32x96xbf16, #tpu.memory_space<vmem>>, vector<32x96xbf16>
    %cst = arith.constant dense<0.000000e+00> : vector<8x96xf32>
    %3 = tpu.matmul %1, %2, %cst {dimension_numbers = #tpu.dot_dimension_numbers<[1], [0], [0], [1], [0, 0, 1, 1], [], []>} : vector<8x32xbf16>, vector<32x96xbf16>, vector<8x96xf32> -> vector<8x96xf32>
    %c0_3 = arith.constant 0 : index
    %c0_4 = arith.constant 0 : index
    %4 = vector.load %arg3[%c0_3, %c0_4] : memref<1x96xf32, #tpu.memory_space<vmem>>, vector<1x96xf32>
    %5 = vector.broadcast %4 : vector<1x96xf32> to vector<8x96xf32>
    %6 = arith.addf %3, %5 : vector<8x96xf32>
    %7 = arith.truncf %6 : vector<8x96xf32> to vector<8x96xbf16>
    %c0_5 = arith.constant 0 : index
    %c0_6 = arith.constant 0 : index
    %8 = vector.load %arg4[%c0_5, %c0_6] : memref<8x96xbf16, #tpu.memory_space<vmem>>, vector<8x96xbf16>
    tpu.vector_store %arg4[%c0_5, %c0_6], %7 {strides = array<i32>} : memref<8x96xbf16, #tpu.memory_space<vmem>>, vector<8x96xbf16>,
    return
  }
  func.func @transform_0(%arg0: i32) -> (i32, i32) {
    %c0_i32 = arith.constant 0 : i32
    %c0_i32_0 = arith.constant 0 : i32
    return %arg0, %c0_i32 : i32, i32
  }
  func.func @transform_1(%arg0: i32) -> (i32, i32) {
    %c0_i32 = arith.constant 0 : i32
    %c0_i32_0 = arith.constant 0 : i32
    %c0_i32_1 = arith.constant 0 : i32
    return %c0_i32, %c0_i32_0 : i32, i32
  }
  func.func @transform_2(%arg0: i32) -> (i32, i32) {
    %c0_i32 = arith.constant 0 : i32
    %c0_i32_0 = arith.constant 0 : i32
    %c0_i32_1 = arith.constant 0 : i32
    return %c0_i32, %c0_i32_0 : i32, i32
  }
  func.func @transform_3(%arg0: i32) -> (i32, i32) {
    %c0_i32 = arith.constant 0 : i32
    %c0_i32_0 = arith.constant 0 : i32
    return %arg0, %c0_i32 : i32, i32
  }
}

</mosaic_0001>

<llo_original>
// kernel: tpu_custom_call.1
$region0: #{tpu_custom_call.1}
  #allocation0 [shape = 'u32[]', space=smem, size = 0x4, offset = 0x4, fixed_abs, tag = 'smem constant byte address 0x4 - core index']
  #allocation1 [shape = 'u32[144,128]{1,0:T(1,128)}', space=vmem, size = 0x12000, scoped, tag = 'internal scratch']
  %s0 = inlined_call_operand.hbm [shape: f32[8,32], index: 0, kind: input, shape index: {}]
  %s1 = inlined_call_operand.hbm [shape: bf16[32,96], index: 1, kind: input, shape index: {}]
  %s2 = inlined_call_operand.vmem [shape: f32[1,96], index: 2, kind: input, shape index: {}]
  %s3 = inlined_call_operand.hbm [shape: bf16[8,96], index: 3, kind: output, shape index: {}]
  %s4 = sld [smem:[#allocation0]]
  $region30: #{tpu_custom_call.1} parent=0
    _
  %s6 = ssub.s32 1, %s4
  %s7 = scalar_select 0, %s6, %s4
  $region1: #{tpu_custom_call.1} parent=0
    #allocation2 [shape = 'u8[4096]{0}', space=vmem, size = 0x1000, scoped, tag = 'input window, operand 0, single buffered']
    #allocation3 [shape = 's32[1]{0}', space=sflag, size = 0x4, scoped, tag = 'scoped memory for tpu_custom_call.1']
    #allocation4 [shape = 's32[1]{0}', space=sflag, size = 0x4, scoped, tag = 'scoped memory for tpu_custom_call.1']
    #allocation5 [shape = 'u8[8192]{0}', space=vmem, size = 0x2000, scoped, tag = 'input window, operand 1, single buffered']
    #allocation6 [shape = 's32[1]{0}', space=sflag, size = 0x4, scoped, tag = 'scoped memory for tpu_custom_call.1']
    #allocation7 [shape = 'u8[2048]{0}', space=vmem, size = 0x800, scoped, tag = 'output window, operand 0, single buffered']
    %8 = vsyncpa [#allocation3], 0
    %9 = vsyncpa [#allocation6], 0
    %10 = vsyncpa [#allocation4], 0
    // Predicated region
    $region2: #{tpu_custom_call.1} parent=1 // pred_check
      _
    $region3: #{tpu_custom_call.1} parent=1 // pred_check_branch
      %12 = sbr.rel (0) target = $region5
    $region4: #{tpu_custom_call.1} parent=1 // pred_region
      %s14 = ssub.s32 128, 128
      %15 = vsyncadd [#allocation3], %s14
      %s17 = sshll.u32 [#allocation2], 4
      %s18 = int_to_ptr.vmem [resolvable:$true] %s17
      %20 = dma.hbm_to_vmem [thread:$0]  %s0, 128, %s18, [#allocation3]
    $region5: #{tpu_custom_call.1} parent=1 // pred_fallthru
      _
    // Predicated region
    $region6: #{tpu_custom_call.1} parent=1 // pred_check
      _
    $region7: #{tpu_custom_call.1} parent=1 // pred_check_branch
      %22 = sbr.rel (0) target = $region9
    $region8: #{tpu_custom_call.1} parent=1 // pred_region
      %s24 = ssub.s32 256, 256
      %25 = vsyncadd [#allocation6], %s24
      %s26 = sshll.u32 [#allocation5], 4
      %s27 = int_to_ptr.vmem [resolvable:$true] %s26
      %32 = dma.hbm_to_vmem [thread:$0]  %s1, 256, %s27, [#allocation6], 64, 64, 4
    $region9: #{tpu_custom_call.1} parent=1 // pred_fallthru
      _
    // Predicated region
    $region10: #{tpu_custom_call.1} parent=1 // pred_check
      _
    $region11: #{tpu_custom_call.1} parent=1 // pred_check_branch
      %34 = sbr.rel (0) target = $region13
    $region12: #{tpu_custom_call.1} parent=1 // pred_region
      _
    $region13: #{tpu_custom_call.1} parent=1 // pred_fallthru
      _
    // Predicated region
    $region14: #{tpu_custom_call.1} parent=1 // pred_check
      _
    $region15: #{tpu_custom_call.1} parent=1 // pred_check_branch
      %36 = sbr.rel (0) target = $region17
    $region16: #{tpu_custom_call.1} parent=1 // pred_region
      %37 = dma.done [#allocation3], 128
    $region17: #{tpu_custom_call.1} parent=1 // pred_fallthru
      _
    // Predicated region
    $region18: #{tpu_custom_call.1} parent=1 // pred_check
      _
    $region19: #{tpu_custom_call.1} parent=1 // pred_check_branch
      %39 = sbr.rel (0) target = $region21
    $region20: #{tpu_custom_call.1} parent=1 // pred_region
      %40 = dma.done [#allocation6], 256
    $region21: #{tpu_custom_call.1} parent=1 // pred_fallthru
      _
    %v42 = vld [vmem:[#allocation2] sm:$0xff]
    %v43 = vpack.c.bf16 %v42, %v42
    %v44 = vld [vmem:[#allocation5] sm:$0xf]
    %v45 = vld [vmem:[#allocation5 + $0x4] sm:$0xf]
    %v46 = vld [vmem:[#allocation5 + $0x8] sm:$0xf]
    %v47 = vld [vmem:[#allocation5 + $0xc] sm:$0xf]
    %v48 = vld [vmem:[%s2] sm:$0x1]
    %v50 = vlaneseq
    %v51 = vshrl.u32 %v50, 7
    %v52 = vsub.s32 0, %v51
    %v53 = vrot.slane %v48, %v52
    %v59 = vunpack.c.l.b16 %v44
    %v60 = vunpack.c.l.b16 %v45
    %v61 = vunpack.c.l.b16 %v46
    %v62 = vunpack.c.l.b16 %v47
    %v63 = vpack.c.b16 %v60, %v59
    %v64 = vpack.c.b16 %v62, %v61
    %vm67 = vcmask 261120
    %v69 = vsel %vm67, %v43, 0
    %71 = vmatprep.subr.bf16.mxu0 0
    %72 = vmatpush1.bf16.msra.mxu0 %v63
    %73 = vmatprep.subr.bf16.mxu0 0
    %74 = vmatpush1.bf16.msra.mxu0 %v64
    %75 = vmatprep.subr.bf16.mxu0 0
    %76 = vmatpush1.bf16.msra.mxu0 0
    %77 = vmatprep.subr.bf16.mxu0 0
    %78 = vmatpush1.bf16.msra.mxu0 0
    %79 = vmatprep.subr.bf16.mxu0 0
    %80 = vmatpush1.bf16.msra.mxu0 0
    %81 = vmatprep.subr.bf16.mxu0 0
    %82 = vmatpush1.bf16.msra.mxu0 0
    %83 = vmatprep.subr.bf16.mxu0 0
    %84 = vmatpush1.bf16.msra.mxu0 0
    %85 = vmatprep.subr.bf16.mxu0 0
    %86 = vmatpush1.bf16.msra.mxu0 0
    %87 = vmatprep.subr.bf16.mxu0 0
    %88 = vmatpush1.bf16.msra.mxu0 0
    %89 = vmatprep.subr.bf16.mxu0 0
    %90 = vmatpush1.bf16.msra.mxu0 0
    %91 = vmatprep.subr.bf16.mxu0 0
    %92 = vmatpush1.bf16.msra.mxu0 0
    %93 = vmatprep.subr.bf16.mxu0 0
    %94 = vmatpush1.bf16.msra.mxu0 0
    %95 = vmatprep.subr.bf16.mxu0 0
    %96 = vmatpush1.bf16.msra.mxu0 0
    %97 = vmatprep.subr.bf16.mxu0 0
    %98 = vmatpush1.bf16.msra.mxu0 0
    %99 = vmatprep.subr.bf16.mxu0 0
    %100 = vmatpush1.bf16.msra.mxu0 0
    %101 = vmatprep.subr.bf16.mxu0 0
    %102 = vmatpush1.bf16.msra.mxu0 0
    %103 = vmatprep.mubr.bf16.mxu0 0
    %104 = vmatmul.mubr.bf16.gmra.mrb[0].mxu0 %v69
    %v105 = vpop.f32.mrb[0].mxu0
    %v106 = vadd.f32 %v53, %v105
    %v107 = vpop.f32.mrb[0].mxu0
    %v108 = vpop.f32.mrb[0].mxu0
    %v109 = vpop.f32.mrb[0].mxu0
    %110 = vdwg.mxu0
    %v111 = vpack.c.bf16 %v106, %v106
    %vm112 = vcmask 781312
    %113 = vst.msk [vmem:[#allocation7] sm:$0xf] %vm112, %v111
    // Predicated region
    $region22: #{tpu_custom_call.1} parent=1 // pred_check
      _
    $region23: #{tpu_custom_call.1} parent=1 // pred_check_branch
      %115 = sbr.rel (0) target = $region25
    $region24: #{tpu_custom_call.1} parent=1 // pred_region
      %s117 = ssub.s32 64, 64
      %118 = vsyncadd [#allocation4], %s117
      %s120 = sshll.u32 [#allocation7], 4
      %s121 = int_to_ptr.vmem [resolvable:$true] %s120
      %123 = dma.vmem_to_hbm [thread:$0]  %s121, 64, %s3, [#allocation4]
    $region25: #{tpu_custom_call.1} parent=1 // pred_fallthru
      _
    // Predicated region
    $region26: #{tpu_custom_call.1} parent=1 // pred_check
      _
    $region27: #{tpu_custom_call.1} parent=1 // pred_check_branch
      %125 = sbr.rel (0) target = $region29
    $region28: #{tpu_custom_call.1} parent=1 // pred_region
      %126 = dma.done [#allocation4], 64
    $region29: #{tpu_custom_call.1} parent=1 // pred_fallthru
      _
    %127 = vsyncpa [#allocation3], 1
    %128 = vsyncpa [#allocation6], 1
    %129 = vsyncpa [#allocation4], 1

</llo_original>
